<compile_context>
chip_gen: v6e
topology: v6e:2x2x1
jax: 0.10.0
libtpu: 0.0.40
codegen_flags: <defaults>
</compile_context>

<pallas_src>
import functools

import jax
import jax.numpy as jnp
from jax.experimental import pallas as pl
from jax.experimental.pallas import tpu as pltpu

_LANES = 128
_VMEM_LIMIT_BYTES = 48 * 1024 * 1024      # valid on v5e/v6e (128 MiB) and v7x (64 MiB)
_SMALL_AWKWARD_BYTES = 1 * 1024 * 1024    # whole-array fallback threshold


def _shadow_kernel(x_ref, o_ref):
    # clip(max=0.0) -> minimum with 0.  Compute in f32 (free: kernel is
    # HBM-bound; the cast is a VPU op on already-loaded vregs, and it handles
    # integer / low-precision inputs), exp runs on the EUP (separate slot).
    x = x_ref[...].astype(jnp.float32)
    o_ref[...] = jnp.exp(0.4 * jnp.minimum(x, 0.0)).astype(o_ref.dtype)


@functools.lru_cache(maxsize=None)
def _chip_traits():
    """Returns (per-buffer tile bytes, TensorCores sharing the grid)."""
    try:
        kind = jax.devices()[0].device_kind.lower()
    except Exception:  # no device info at trace time -> conservative defaults
        kind = ""
    if "v5" in kind:
        # ~820 GB/s HBM: 4 MiB is already ~10 us/step; bigger only adds
        # pipeline-fill latency and VMEM pressure.
        tile_bytes = 4 * 1024 * 1024
    else:
        # v6e (~1.4 TB/s) / v7x (~3.2 TB/s): 8 MiB keeps the ~0.35 us/step
        # overhead at ~5%.  in+out double-buffered = 32 MiB, fits everywhere.
        tile_bytes = 8 * 1024 * 1024
    num_cores = 2 if "v7" in kind else 1  # v7x: 2 TCs/chip share parallel grid axes
    return tile_bytes, num_cores


def _blocked_call(x2d, out_dtype, donate):
    """Streaming elementwise kernel over a lane-dense (rows, 128) slab."""
    rows, lanes = x2d.shape
    n = rows * lanes
    in_item = jnp.dtype(x2d.dtype).itemsize
    out_item = jnp.dtype(out_dtype).itemsize
    # Sublane alignment: 8 (4-byte), 16 (2-byte), 32 (1-byte); cover in & out.
    sublanes = max(8, 32 // min(in_item, out_item))

    tile_bytes, num_cores = _chip_traits()
    max_block_rows = max(
        sublanes,
        (tile_bytes // (lanes * max(in_item, out_item))) // sublanes * sublanes,
    )

    num_blocks = pl.cdiv(rows, max_block_rows)
    if num_cores > 1 and rows >= num_cores * sublanes:
        # Balance across TensorCores: multiple-of-num_cores step count with
        # near-equal blocks (the chip runs at the slower core's rate).
        num_blocks = max(num_blocks, num_cores)
        num_blocks = pl.cdiv(num_blocks, num_cores) * num_cores

    if num_blocks <= 1:
        block_rows = rows  # full-extent block: always layout-legal
    else:
        block_rows = max(
            sublanes, pl.cdiv(pl.cdiv(rows, num_blocks), sublanes) * sublanes
        )
    grid = (pl.cdiv(rows, block_rows),)

    kwargs = {}
    if donate and x2d.dtype == jnp.dtype(out_dtype):
        # In/out BlockSpecs are identical -> aliasing is safe; halves peak HBM
        # footprint when the caller can donate `shadow`.
        kwargs["input_output_aliases"] = {0: 0}

    return pl.pallas_call(
        _shadow_kernel,
        out_shape=jax.ShapeDtypeStruct((rows, lanes), out_dtype),
        grid_spec=pltpu.PrefetchScalarGridSpec(
            num_scalar_prefetch=0,
            grid=grid,
            in_specs=[pl.BlockSpec((block_rows, lanes), lambda i: (i, 0))],
            out_specs=pl.BlockSpec((block_rows, lanes), lambda i: (i, 0)),
        ),
        compiler_params=pltpu.CompilerParams(
            dimension_semantics=("parallel",),
            vmem_limit_bytes=_VMEM_LIMIT_BYTES,
            allow_input_fusion=[True],
        ),
        cost_estimate=pl.CostEstimate(
            flops=2 * n,
            transcendentals=n,
            bytes_accessed=n * (in_item + out_item),
        ),
        **kwargs,
    )(x2d)


@functools.partial(jax.jit, static_argnames=("donate",))
def shadow_map(shadow: jax.Array, donate: bool = False) -> jax.Array:
    """exp(0.4 * clip(shadow, max=0.0)), elementwise, any shape."""
    orig_shape = shadow.shape
    # torch.exp promotes integer inputs to float32; mirror that, but do the
    # cast inside the kernel instead of a separate full-HBM-pass astype here.
    out_dtype = (
        shadow.dtype if jnp.issubdtype(shadow.dtype, jnp.floating) else jnp.float32
    )

    n = shadow.size
    if n == 0:
        return jnp.zeros(orig_shape, out_dtype)

    flat = shadow.reshape(-1)
    in_item = jnp.dtype(shadow.dtype).itemsize
    out_item = jnp.dtype(out_dtype).itemsize

    if n % _LANES == 0:
        # Common case: zero-copy reshape to a lane-dense (rows, 128) slab and
        # an exact-size output -> no pad, no trailing slice, no extra HBM pass.
        out2d = _blocked_call(flat.reshape(n // _LANES, _LANES), out_dtype, donate)
        return out2d.reshape(orig_shape)

    if n * max(in_item, out_item) <= _SMALL_AWKWARD_BYTES:
        # Awkward small sizes: whole-array (1, n) block (full-extent blocks are
        # always layout-legal), still no pad / slice HBM passes.
        out = pl.pallas_call(
            _shadow_kernel,
            out_shape=jax.ShapeDtypeStruct((1, n), out_dtype),
            compiler_params=pltpu.CompilerParams(
                vmem_limit_bytes=_VMEM_LIMIT_BYTES
            ),
        )(flat.reshape(1, n))
        return out.reshape(orig_shape)

    # TODO(synk): large non-multiple-of-128 sizes still pay one pad + one slice
    # HBM pass; replace with a 1-D blocked BlockSpec over the flat (n,) view
    # (ragged final block masked by Pallas) to make this path zero-copy too.
    sublanes = max(8, 32 // min(in_item, out_item))
    tile_elems = sublanes * _LANES
    padded_n = pl.cdiv(n, tile_elems) * tile_elems
    flat = jnp.pad(flat, (0, padded_n - n))
    out2d = _blocked_call(flat.reshape(padded_n // _LANES, _LANES), out_dtype, False)
    return out2d.reshape(-1)[:n].reshape(orig_shape)


if __name__ == "__main__":
    key = jax.random.PRNGKey(0)
    k1, k2 = jax.random.split(key)

    # Small NCHW-style shadow-map tensor (lane-aligned main path).
    x = jax.random.normal(k1, (2, 4, 16, 16), dtype=jnp.float32)
    out = jax.block_until_ready(shadow_map(x))
    ref = jnp.exp(0.4 * jnp.minimum(x, 0.0))
    assert out.shape == x.shape and out.dtype == x.dtype
    assert jnp.allclose(out, ref, atol=1e-6, rtol=1e-6)

    # Awkward (non-multiple-of-128) element count -> whole-array path.
    y = jax.random.normal(k2, (3, 5, 7), dtype=jnp.float32)
    out_y = jax.block_until_ready(shadow_map(y))
    ref_y = jnp.exp(0.4 * jnp.minimum(y, 0.0))
    assert out_y.shape == y.shape and out_y.dtype == y.dtype
    assert jnp.allclose(out_y, ref_y, atol=1e-6, rtol=1e-6)

    # Integer input: promotion to float32 happens inside the kernel.
    xi = (x * 4.0).astype(jnp.int32)
    out_i = jax.block_until_ready(shadow_map(xi))
    ref_i = jnp.exp(0.4 * jnp.minimum(xi.astype(jnp.float32), 0.0))
    assert out_i.dtype == jnp.float32
    assert jnp.allclose(out_i, ref_i, atol=1e-6, rtol=1e-6)

    print("KERNEL_OK")
</pallas_src>

<mosaic_0001>
module attributes {stable_mosaic.version = 11 : i64} {
  func.func @_shadow_kernel(%arg0: i32, %arg1: memref<16x128xf32, #tpu.memory_space<vmem>>, %arg2: memref<16x128xf32, #tpu.memory_space<vmem>>) attributes {dimension_semantics = [#tpu.dimension_semantics<parallel>], iteration_bounds = array<i64: 1>, scalar_prefetch = 0 : i64, scratch_operands = 0 : i64, tpu.core_type = #tpu.core_type<tc>, window_params = [{transform_indices = @transform_0, window_bounds = array<i64: 16, 128>}, {transform_indices = @transform_1, window_bounds = array<i64: 16, 128>}]} {
    %c0 = arith.constant 0 : index
    %c0_0 = arith.constant 0 : index
    %0 = vector.load %arg1[%c0, %c0_0] : memref<16x128xf32, #tpu.memory_space<vmem>>, vector<16x128xf32>
    %cst = arith.constant 0.000000e+00 : f32
    %1 = vector.broadcast %cst : f32 to vector<16x128xf32>
    %2 = arith.minimumf %0, %1 : vector<16x128xf32>
    %cst_1 = arith.constant 4.000000e-01 : f32
    %3 = vector.broadcast %cst_1 : f32 to vector<16x128xf32>
    %4 = arith.mulf %3, %2 : vector<16x128xf32>
    %5 = math.exp %4 : vector<16x128xf32>
    %c0_2 = arith.constant 0 : index
    %c0_3 = arith.constant 0 : index
    %6 = vector.load %arg2[%c0_2, %c0_3] : memref<16x128xf32, #tpu.memory_space<vmem>>, vector<16x128xf32>
    tpu.vector_store %arg2[%c0_2, %c0_3], %5 {strides = array<i32>} : memref<16x128xf32, #tpu.memory_space<vmem>>, vector<16x128xf32>,
    return
  }
  func.func @transform_0(%arg0: i32) -> (i32, i32) {
    %c0_i32 = arith.constant 0 : i32
    %c0_i32_0 = arith.constant 0 : i32
    return %arg0, %c0_i32 : i32, i32
  }
  func.func @transform_1(%arg0: i32) -> (i32, i32) {
    %c0_i32 = arith.constant 0 : i32
    %c0_i32_0 = arith.constant 0 : i32
    return %arg0, %c0_i32 : i32, i32
  }
}

</mosaic_0001>

<llo_original>
// kernel: shadow_map.1
$region0: #{shadow_map.1}
  #allocation0 [shape = 'u32[]', space=smem, size = 0x4, offset = 0x4, fixed_abs, tag = 'smem constant byte address 0x4 - core index']
  #allocation1 [shape = 'u32[144,128]{1,0:T(1,128)}', space=vmem, size = 0x12000, scoped, tag = 'internal scratch']
  %s0 = inlined_call_operand.vmem [shape: f32[16,128], index: 0, kind: input, shape index: {}]
  %s1 = inlined_call_operand.vmem [shape: f32[16,128], index: 1, kind: output, shape index: {}]
  %s2 = sld [smem:[#allocation0]]
  $region14: #{shadow_map.1} parent=0
    _
  %s4 = ssub.s32 1, %s2
  %s5 = scalar_select 0, %s4, %s2
  // Predicated region
  $region2: #{shadow_map.1} parent=0 // pred_check
    _
  $region3: #{shadow_map.1} parent=0 // pred_check_branch
    %7 = sbr.rel (0) target = $region5
  $region4: #{shadow_map.1} parent=0 // pred_region
    _
  $region5: #{shadow_map.1} parent=0 // pred_fallthru
    _
  %v8 = vld [vmem:[%s0] sm:$0xff]
  %v9 = vld [vmem:[%s0 + $0x8] sm:$0xff]
  %v10 = vmin.f32 %v8, 0.0
  %v11 = vmin.f32 %v9, 0.0
  %v12 = vmul.f32 %v10, 0.4
  %v13 = vmul.f32 %v11, 0.4
  %v14 = vmul.f32 %v12, 1.442695
  %v15 = vpow.pop %v14
  %v16 = vmul.f32 %v13, 1.442695
  %v17 = vpow.pop %v16
  %18 = vst [vmem:[%s1] sm:$0xff] %v15
  %19 = vst [vmem:[%s1 + $0x8] sm:$0xff] %v17
  // Predicated region
  $region6: #{shadow_map.1} parent=0 // pred_check
    _
  $region7: #{shadow_map.1} parent=0 // pred_check_branch
    %21 = sbr.rel (0) target = $region9
  $region8: #{shadow_map.1} parent=0 // pred_region
    _
  $region9: #{shadow_map.1} parent=0 // pred_fallthru
    _
  // Predicated region
  $region10: #{shadow_map.1} parent=0 // pred_check
    _
  $region11: #{shadow_map.1} parent=0 // pred_check_branch
    %23 = sbr.rel (0) target = $region13
  $region12: #{shadow_map.1} parent=0 // pred_region
    _
  $region13: #{shadow_map.1} parent=0 // pred_fallthru
    _

</llo_original>
